<compile_context>
chip_gen: v5e
topology: v5e:2x2
jax: 0.10.0
libtpu: 0.0.40
codegen_flags: <defaults>
</compile_context>

<pallas_src>
import jax
import jax.numpy as jnp
from jax.experimental import pallas as pl
from jax.experimental.pallas import tpu as pltpu

INPUT_DIM = 4
NUM_ACTIONS = 2
HIDDENS = [128, 256, 128, 64]

K_PAD = 8        # first-layer K padded 4 -> 8 (sublane-friendly)
H4_PAD = 128     # hidden layer 4 padded 64 -> 128 (lane-dense intermediate)
OUT_PAD = 128    # last-layer N padded 2 -> 128 (lane-dense, unmasked stores)


def dqn_kernel(x_ref,
               w1_ref, b1_ref,
               w2_ref, b2_ref,
               w3_ref, b3_ref,
               w4_ref, b4_ref,
               w5_ref, b5_ref,
               o_ref):
    # x is already bf16; matmuls run the native bf16 MXU path with f32
    # accumulation; ReLUs run on bf16 vregs (packed, half the VALU ops).
    h = x_ref[...]                                                   # (tm, 8) bf16

    # Linear(4->128) + ReLU   (w1 zero-padded to (8, 128))
    z = jnp.dot(h, w1_ref[...], preferred_element_type=jnp.float32) + b1_ref[...]
    h = jnp.maximum(z.astype(jnp.bfloat16), 0)

    # Linear(128->256) + ReLU
    z = jnp.dot(h, w2_ref[...], preferred_element_type=jnp.float32) + b2_ref[...]
    h = jnp.maximum(z.astype(jnp.bfloat16), 0)

    # Linear(256->128) + ReLU
    z = jnp.dot(h, w3_ref[...], preferred_element_type=jnp.float32) + b3_ref[...]
    h = jnp.maximum(z.astype(jnp.bfloat16), 0)

    # Linear(128->64) + ReLU   (w4 zero-padded to (128, 128); cols 64.. are exact zeros)
    z = jnp.dot(h, w4_ref[...], preferred_element_type=jnp.float32) + b4_ref[...]
    h = jnp.maximum(z.astype(jnp.bfloat16), 0)

    # Linear(64->2)            (w5 zero-padded to (128, 128); cols 2.. are exact zeros)
    z = jnp.dot(h, w5_ref[...], preferred_element_type=jnp.float32) + b5_ref[...]
    o_ref[...] = z.astype(o_ref.dtype)


def init_dqn_params(key, input_dim=INPUT_DIM, num_actions=NUM_ACTIONS):
    """Deterministic init mimicking PyTorch nn.Linear default (U[-1/sqrt(fan_in), ...])."""
    dims = [input_dim] + HIDDENS + [num_actions]
    params = []
    for i in range(len(dims) - 1):
        fan_in, fan_out = dims[i], dims[i + 1]
        key, kw, kb = jax.random.split(key, 3)
        bound = 1.0 / jnp.sqrt(jnp.float32(fan_in))
        w = jax.random.uniform(kw, (fan_in, fan_out), jnp.float32, -bound, bound)
        b = jax.random.uniform(kb, (1, fan_out), jnp.float32, -bound, bound)
        params.append((w, b))
    return params


def prepare_params(params):
    """Kernel-ready params: bf16 weights, f32 biases, zero-padded so every
    matmul operand and every intermediate activation is lane-dense."""
    n = len(params)
    prepared = []
    for i, (w, b) in enumerate(params):
        w = w.astype(jnp.bfloat16)
        b = b.astype(jnp.float32)
        if i == 0:                                     # (4,128) -> (8,128)
            w = jnp.pad(w, ((0, K_PAD - w.shape[0]), (0, 0)))
        if i == n - 2:                                 # (128,64)->(128,128), b->(1,128)
            w = jnp.pad(w, ((0, 0), (0, H4_PAD - w.shape[1])))
            b = jnp.pad(b, ((0, 0), (0, H4_PAD - b.shape[1])))
        if i == n - 1:                                 # (64,2) -> (128,128), b->(1,128)
            w = jnp.pad(w, ((0, H4_PAD - w.shape[0]), (0, OUT_PAD - w.shape[1])))
            b = jnp.pad(b, ((0, 0), (0, OUT_PAD - b.shape[1])))
        prepared.append((w, b))
    return prepared


def _round_up(n, m):
    return ((n + m - 1) // m) * m


def _pick_tm(batch):
    """Spill-aware batch-tile choice (see perf notes at top of file)."""
    rb = _round_up(max(int(batch), 1), 16)
    if rb <= 128:
        return rb                      # clamp tile to (rounded) batch
    kind = ""
    try:
        kind = jax.devices()[0].device_kind.lower()
    except Exception:
        pass
    if "v7" in kind:
        # Ensure >= 2 grid steps so the "parallel" batch axis can shard
        # across both TensorCores (weights are duplicated per core, ~170 KiB).
        return max(128, min(512, _round_up(pl.cdiv(rb, 2), 16)))
    # 128 keeps the (tm, 256) f32 activation at ~32 vregs (no full-file spill);
    # only very large eval batches amortize bigger tiles against step overhead.
    return 128 if rb <= 4096 else 512


def dqn_forward(x, prepared_params, *, tm=None, out_dtype=jnp.bfloat16):
    """x: (B, 4) float -> (B, 2) float32 Q-values."""
    B = x.shape[0]
    if tm is None:
        tm = _pick_tm(B)

    b_pad = pl.cdiv(B, tm) * tm
    # Pad features 4 -> 8 (matches zero-padded w1 rows), batch to a tile
    # multiple, and fold the bf16 cast into the copy (halves input DMA).
    xp = jnp.zeros((b_pad, K_PAD), jnp.bfloat16).at[:B, :INPUT_DIM].set(
        x.astype(jnp.bfloat16))

    flat_args = [xp]
    in_specs = [pl.BlockSpec((tm, K_PAD), lambda i: (i, 0))]
    const_map = lambda i: (0, 0)   # weights/biases: same full block every step
    for w, b in prepared_params:
        flat_args.extend([w, b])
        in_specs.append(pl.BlockSpec(w.shape, const_map))
        in_specs.append(pl.BlockSpec(b.shape, const_map))

    # Advisory cost estimate so XLA can overlap this small call with neighbors.
    dims = [INPUT_DIM] + HIDDENS + [NUM_ACTIONS]
    flops_per_row = sum(2 * dims[i] * dims[i + 1] for i in range(len(dims) - 1))
    weight_bytes = sum(int(w.size) * w.dtype.itemsize + int(b.size) * b.dtype.itemsize
                       for w, b in prepared_params)
    cost = pl.CostEstimate(
        flops=flops_per_row * b_pad,
        transcendentals=0,
        bytes_accessed=weight_bytes
        + int(xp.size) * xp.dtype.itemsize
        + b_pad * OUT_PAD * jnp.dtype(out_dtype).itemsize,
    )

    out = pl.pallas_call(
        dqn_kernel,
        grid=(b_pad // tm,),
        in_specs=in_specs,
        out_specs=pl.BlockSpec((tm, OUT_PAD), lambda i: (i, 0)),
        out_shape=jax.ShapeDtypeStruct((b_pad, OUT_PAD), out_dtype),
        compiler_params=pltpu.CompilerParams(dimension_semantics=("parallel",)),
        cost_estimate=cost,
    )(*flat_args)

    return out[:B, :NUM_ACTIONS].astype(jnp.float32)


def dqn_reference(x, params):
    h = x
    for i, (w, b) in enumerate(params):
        h = h @ w + b
        if i < len(params) - 1:
            h = jnp.maximum(h, 0.0)
    return h


if __name__ == "__main__":
    params = init_dqn_params(jax.random.PRNGKey(42))
    prepared = prepare_params(params)

    # Reference uses the same bf16-quantized weights (in f32 math); remaining
    # error is the in-kernel bf16 activation casts + bf16 output rounding.
    ref_params = [(w.astype(jnp.bfloat16).astype(jnp.float32), b) for w, b in params]

    key = jax.random.PRNGKey(0)
    for B in (32, 200):   # small demo batch + a multi-tile / padded batch
        key, kx = jax.random.split(key)
        x = jax.random.normal(kx, (B, INPUT_DIM), jnp.float32)

        out = jax.block_until_ready(dqn_forward(x, prepared))
        ref = dqn_reference(x, ref_params)

        assert out.shape == (B, NUM_ACTIONS)
        assert jnp.allclose(out, ref, atol=3e-2, rtol=3e-2), f"mismatch at B={B}"

    print("KERNEL_OK")
</pallas_src>

<mosaic_0001>
module attributes {stable_mosaic.version = 11 : i64} {
  func.func @dqn_kernel(%arg0: i32, %arg1: memref<32x8xbf16, #tpu.memory_space<vmem>>, %arg2: memref<8x128xbf16, #tpu.memory_space<vmem>>, %arg3: memref<1x128xf32, #tpu.memory_space<vmem>>, %arg4: memref<128x256xbf16, #tpu.memory_space<vmem>>, %arg5: memref<1x256xf32, #tpu.memory_space<vmem>>, %arg6: memref<256x128xbf16, #tpu.memory_space<vmem>>, %arg7: memref<1x128xf32, #tpu.memory_space<vmem>>, %arg8: memref<128x128xbf16, #tpu.memory_space<vmem>>, %arg9: memref<1x128xf32, #tpu.memory_space<vmem>>, %arg10: memref<128x128xbf16, #tpu.memory_space<vmem>>, %arg11: memref<1x128xf32, #tpu.memory_space<vmem>>, %arg12: memref<32x128xbf16, #tpu.memory_space<vmem>>) attributes {dimension_semantics = [#tpu.dimension_semantics<parallel>], iteration_bounds = array<i64: 1>, scalar_prefetch = 0 : i64, scratch_operands = 0 : i64, tpu.core_type = #tpu.core_type<tc>, window_params = [{transform_indices = @transform_0, window_bounds = array<i64: 32, 8>}, {pipeline_mode = #tpu.pipeline_mode<synchronous>, transform_indices = @transform_1, window_bounds = array<i64: 8, 128>}, {pipeline_mode = #tpu.pipeline_mode<synchronous>, transform_indices = @transform_2, window_bounds = array<i64: 1, 128>}, {pipeline_mode = #tpu.pipeline_mode<synchronous>, transform_indices = @transform_3, window_bounds = array<i64: 128, 256>}, {pipeline_mode = #tpu.pipeline_mode<synchronous>, transform_indices = @transform_4, window_bounds = array<i64: 1, 256>}, {pipeline_mode = #tpu.pipeline_mode<synchronous>, transform_indices = @transform_5, window_bounds = array<i64: 256, 128>}, {pipeline_mode = #tpu.pipeline_mode<synchronous>, transform_indices = @transform_6, window_bounds = array<i64: 1, 128>}, {pipeline_mode = #tpu.pipeline_mode<synchronous>, transform_indices = @transform_7, window_bounds = array<i64: 128, 128>}, {pipeline_mode = #tpu.pipeline_mode<synchronous>, transform_indices = @transform_8, window_bounds = array<i64: 1, 128>}, {pipeline_mode = #tpu.pipeline_mode<synchronous>, transform_indices = @transform_9, window_bounds = array<i64: 128, 128>}, {pipeline_mode = #tpu.pipeline_mode<synchronous>, transform_indices = @transform_10, window_bounds = array<i64: 1, 128>}, {transform_indices = @transform_11, window_bounds = array<i64: 32, 128>}]} {
    %c0 = arith.constant 0 : index
    %c0_0 = arith.constant 0 : index
    %0 = vector.load %arg1[%c0, %c0_0] : memref<32x8xbf16, #tpu.memory_space<vmem>>, vector<32x8xbf16>
    %c0_1 = arith.constant 0 : index
    %c0_2 = arith.constant 0 : index
    %1 = vector.load %arg2[%c0_1, %c0_2] : memref<8x128xbf16, #tpu.memory_space<vmem>>, vector<8x128xbf16>
    %cst = arith.constant dense<0.000000e+00> : vector<32x128xf32>
    %2 = tpu.matmul %0, %1, %cst {dimension_numbers = #tpu.dot_dimension_numbers<[1], [0], [0], [1], [0, 0, 1, 1], [], []>} : vector<32x8xbf16>, vector<8x128xbf16>, vector<32x128xf32> -> vector<32x128xf32>
    %c0_3 = arith.constant 0 : index
    %c0_4 = arith.constant 0 : index
    %3 = vector.load %arg3[%c0_3, %c0_4] : memref<1x128xf32, #tpu.memory_space<vmem>>, vector<1x128xf32>
    %4 = vector.broadcast %3 : vector<1x128xf32> to vector<32x128xf32>
    %5 = arith.addf %2, %4 : vector<32x128xf32>
    %6 = arith.truncf %5 : vector<32x128xf32> to vector<32x128xbf16>
    %cst_5 = arith.constant 0.000000e+00 : bf16
    %7 = vector.broadcast %cst_5 : bf16 to vector<32x128xbf16>
    %8 = arith.maximumf %6, %7 : vector<32x128xbf16>
    %c0_6 = arith.constant 0 : index
    %c0_7 = arith.constant 0 : index
    %9 = vector.load %arg4[%c0_6, %c0_7] : memref<128x256xbf16, #tpu.memory_space<vmem>>, vector<128x256xbf16>
    %cst_8 = arith.constant dense<0.000000e+00> : vector<32x256xf32>
    %10 = tpu.matmul %8, %9, %cst_8 {dimension_numbers = #tpu.dot_dimension_numbers<[1], [0], [0], [1], [0, 0, 1, 1], [], []>} : vector<32x128xbf16>, vector<128x256xbf16>, vector<32x256xf32> -> vector<32x256xf32>
    %c0_9 = arith.constant 0 : index
    %c0_10 = arith.constant 0 : index
    %11 = vector.load %arg5[%c0_9, %c0_10] : memref<1x256xf32, #tpu.memory_space<vmem>>, vector<1x256xf32>
    %12 = vector.broadcast %11 : vector<1x256xf32> to vector<32x256xf32>
    %13 = arith.addf %10, %12 : vector<32x256xf32>
    %14 = arith.truncf %13 : vector<32x256xf32> to vector<32x256xbf16>
    %cst_11 = arith.constant 0.000000e+00 : bf16
    %15 = vector.broadcast %cst_11 : bf16 to vector<32x256xbf16>
    %16 = arith.maximumf %14, %15 : vector<32x256xbf16>
    %c0_12 = arith.constant 0 : index
    %c0_13 = arith.constant 0 : index
    %17 = vector.load %arg6[%c0_12, %c0_13] : memref<256x128xbf16, #tpu.memory_space<vmem>>, vector<256x128xbf16>
    %cst_14 = arith.constant dense<0.000000e+00> : vector<32x128xf32>
    %18 = tpu.matmul %16, %17, %cst_14 {dimension_numbers = #tpu.dot_dimension_numbers<[1], [0], [0], [1], [0, 0, 1, 1], [], []>} : vector<32x256xbf16>, vector<256x128xbf16>, vector<32x128xf32> -> vector<32x128xf32>
    %c0_15 = arith.constant 0 : index
    %c0_16 = arith.constant 0 : index
    %19 = vector.load %arg7[%c0_15, %c0_16] : memref<1x128xf32, #tpu.memory_space<vmem>>, vector<1x128xf32>
    %20 = vector.broadcast %19 : vector<1x128xf32> to vector<32x128xf32>
    %21 = arith.addf %18, %20 : vector<32x128xf32>
    %22 = arith.truncf %21 : vector<32x128xf32> to vector<32x128xbf16>
    %cst_17 = arith.constant 0.000000e+00 : bf16
    %23 = vector.broadcast %cst_17 : bf16 to vector<32x128xbf16>
    %24 = arith.maximumf %22, %23 : vector<32x128xbf16>
    %c0_18 = arith.constant 0 : index
    %c0_19 = arith.constant 0 : index
    %25 = vector.load %arg8[%c0_18, %c0_19] : memref<128x128xbf16, #tpu.memory_space<vmem>>, vector<128x128xbf16>
    %cst_20 = arith.constant dense<0.000000e+00> : vector<32x128xf32>
    %26 = tpu.matmul %24, %25, %cst_20 {dimension_numbers = #tpu.dot_dimension_numbers<[1], [0], [0], [1], [0, 0, 1, 1], [], []>} : vector<32x128xbf16>, vector<128x128xbf16>, vector<32x128xf32> -> vector<32x128xf32>
    %c0_21 = arith.constant 0 : index
    %c0_22 = arith.constant 0 : index
    %27 = vector.load %arg9[%c0_21, %c0_22] : memref<1x128xf32, #tpu.memory_space<vmem>>, vector<1x128xf32>
    %28 = vector.broadcast %27 : vector<1x128xf32> to vector<32x128xf32>
    %29 = arith.addf %26, %28 : vector<32x128xf32>
    %30 = arith.truncf %29 : vector<32x128xf32> to vector<32x128xbf16>
    %cst_23 = arith.constant 0.000000e+00 : bf16
    %31 = vector.broadcast %cst_23 : bf16 to vector<32x128xbf16>
    %32 = arith.maximumf %30, %31 : vector<32x128xbf16>
    %c0_24 = arith.constant 0 : index
    %c0_25 = arith.constant 0 : index
    %33 = vector.load %arg10[%c0_24, %c0_25] : memref<128x128xbf16, #tpu.memory_space<vmem>>, vector<128x128xbf16>
    %cst_26 = arith.constant dense<0.000000e+00> : vector<32x128xf32>
    %34 = tpu.matmul %32, %33, %cst_26 {dimension_numbers = #tpu.dot_dimension_numbers<[1], [0], [0], [1], [0, 0, 1, 1], [], []>} : vector<32x128xbf16>, vector<128x128xbf16>, vector<32x128xf32> -> vector<32x128xf32>
    %c0_27 = arith.constant 0 : index
    %c0_28 = arith.constant 0 : index
    %35 = vector.load %arg11[%c0_27, %c0_28] : memref<1x128xf32, #tpu.memory_space<vmem>>, vector<1x128xf32>
    %36 = vector.broadcast %35 : vector<1x128xf32> to vector<32x128xf32>
    %37 = arith.addf %34, %36 : vector<32x128xf32>
    %38 = arith.truncf %37 : vector<32x128xf32> to vector<32x128xbf16>
    %c0_29 = arith.constant 0 : index
    %c0_30 = arith.constant 0 : index
    %39 = vector.load %arg12[%c0_29, %c0_30] : memref<32x128xbf16, #tpu.memory_space<vmem>>, vector<32x128xbf16>
    tpu.vector_store %arg12[%c0_29, %c0_30], %38 {strides = array<i32>} : memref<32x128xbf16, #tpu.memory_space<vmem>>, vector<32x128xbf16>,
    return
  }
  func.func @transform_0(%arg0: i32) -> (i32, i32) {
    %c0_i32 = arith.constant 0 : i32
    %c0_i32_0 = arith.constant 0 : i32
    return %arg0, %c0_i32 : i32, i32
  }
  func.func @transform_1(%arg0: i32) -> (i32, i32) {
    %c0_i32 = arith.constant 0 : i32
    %c0_i32_0 = arith.constant 0 : i32
    %c0_i32_1 = arith.constant 0 : i32
    return %c0_i32, %c0_i32_0 : i32, i32
  }
  func.func @transform_2(%arg0: i32) -> (i32, i32) {
    %c0_i32 = arith.constant 0 : i32
    %c0_i32_0 = arith.constant 0 : i32
    %c0_i32_1 = arith.constant 0 : i32
    return %c0_i32, %c0_i32_0 : i32, i32
  }
  func.func @transform_3(%arg0: i32) -> (i32, i32) {
    %c0_i32 = arith.constant 0 : i32
    %c0_i32_0 = arith.constant 0 : i32
    %c0_i32_1 = arith.constant 0 : i32
    return %c0_i32, %c0_i32_0 : i32, i32
  }
  func.func @transform_4(%arg0: i32) -> (i32, i32) {
    %c0_i32 = arith.constant 0 : i32
    %c0_i32_0 = arith.constant 0 : i32
    %c0_i32_1 = arith.constant 0 : i32
    return %c0_i32, %c0_i32_0 : i32, i32
  }
  func.func @transform_5(%arg0: i32) -> (i32, i32) {
    %c0_i32 = arith.constant 0 : i32
    %c0_i32_0 = arith.constant 0 : i32
    %c0_i32_1 = arith.constant 0 : i32
    return %c0_i32, %c0_i32_0 : i32, i32
  }
  func.func @transform_6(%arg0: i32) -> (i32, i32) {
    %c0_i32 = arith.constant 0 : i32
    %c0_i32_0 = arith.constant 0 : i32
    %c0_i32_1 = arith.constant 0 : i32
    return %c0_i32, %c0_i32_0 : i32, i32
  }
  func.func @transform_7(%arg0: i32) -> (i32, i32) {
    %c0_i32 = arith.constant 0 : i32
    %c0_i32_0 = arith.constant 0 : i32
    %c0_i32_1 = arith.constant 0 : i32
    return %c0_i32, %c0_i32_0 : i32, i32
  }
  func.func @transform_8(%arg0: i32) -> (i32, i32) {
    %c0_i32 = arith.constant 0 : i32
    %c0_i32_0 = arith.constant 0 : i32
    %c0_i32_1 = arith.constant 0 : i32
    return %c0_i32, %c0_i32_0 : i32, i32
  }
  func.func @transform_9(%arg0: i32) -> (i32, i32) {
    %c0_i32 = arith.constant 0 : i32
    %c0_i32_0 = arith.constant 0 : i32
    %c0_i32_1 = arith.constant 0 : i32
    return %c0_i32, %c0_i32_0 : i32, i32
  }
  func.func @transform_10(%arg0: i32) -> (i32, i32) {
    %c0_i32 = arith.constant 0 : i32
    %c0_i32_0 = arith.constant 0 : i32
    %c0_i32_1 = arith.constant 0 : i32
    return %c0_i32, %c0_i32_0 : i32, i32
  }
  func.func @transform_11(%arg0: i32) -> (i32, i32) {
    %c0_i32 = arith.constant 0 : i32
    %c0_i32_0 = arith.constant 0 : i32
    return %arg0, %c0_i32 : i32, i32
  }
}

</mosaic_0001>

<llo_original>
// kernel: tpu_custom_call.1
$region0: #{tpu_custom_call.1}
  #allocation0 [shape = 'u32[]', space=smem, size = 0x4, offset = 0x4, fixed_abs, tag = 'smem constant byte address 0x4 - core index']
  #allocation1 [shape = 'u32[72,128]{1,0:T(1,128)}', space=vmem, size = 0x9000, scoped, tag = 'internal scratch']
  %s0 = inlined_call_operand.vmem [shape: bf16[32,8], index: 0, kind: input, shape index: {}]
  %s1 = inlined_call_operand.vmem [shape: bf16[8,128], index: 1, kind: input, shape index: {}]
  %s2 = inlined_call_operand.vmem [shape: f32[1,128], index: 2, kind: input, shape index: {}]
  %s3 = inlined_call_operand.hbm [shape: bf16[128,256], index: 3, kind: input, shape index: {}]
  %s4 = inlined_call_operand.vmem [shape: f32[1,256], index: 4, kind: input, shape index: {}]
  %s5 = inlined_call_operand.hbm [shape: bf16[256,128], index: 5, kind: input, shape index: {}]
  %s6 = inlined_call_operand.vmem [shape: f32[1,128], index: 6, kind: input, shape index: {}]
  %s7 = inlined_call_operand.hbm [shape: bf16[128,128], index: 7, kind: input, shape index: {}]
  %s8 = inlined_call_operand.vmem [shape: f32[1,128], index: 8, kind: input, shape index: {}]
  %s9 = inlined_call_operand.hbm [shape: bf16[128,128], index: 9, kind: input, shape index: {}]
  %s10 = inlined_call_operand.vmem [shape: f32[1,128], index: 10, kind: input, shape index: {}]
  %s11 = inlined_call_operand.hbm [shape: bf16[32,128], index: 11, kind: output, shape index: {}]
  %s12 = sld [smem:[#allocation0]]
  $region70: #{tpu_custom_call.1} parent=0
    _
  %s14 = ssub.s32 1, %s12
  %s15 = scalar_select 0, %s14, %s12
  $region1: #{tpu_custom_call.1} parent=0
    #allocation2 [shape = 'u8[65536]{0}', space=vmem, size = 0x10000, scoped, tag = 'input window, operand 3, single buffered']
    #allocation3 [shape = 's32[1]{0}', space=sflag, size = 0x4, scoped, tag = 'scoped memory for tpu_custom_call.1']
    #allocation4 [shape = 's32[1]{0}', space=sflag, size = 0x4, scoped, tag = 'scoped memory for tpu_custom_call.1']
    #allocation5 [shape = 'u8[65536]{0}', space=vmem, size = 0x10000, scoped, tag = 'input window, operand 5, single buffered']
    #allocation6 [shape = 's32[1]{0}', space=sflag, size = 0x4, scoped, tag = 'scoped memory for tpu_custom_call.1']
    #allocation7 [shape = 'u8[32768]{0}', space=vmem, size = 0x8000, scoped, tag = 'input window, operand 7, single buffered']
    #allocation8 [shape = 'u8[32768]{0}', space=vmem, size = 0x8000, scoped, tag = 'input window, operand 9, single buffered']
    #allocation9 [shape = 's32[1]{0}', space=sflag, size = 0x4, scoped, tag = 'scoped memory for tpu_custom_call.1']
    #allocation10 [shape = 'u8[8192]{0}', space=vmem, size = 0x2000, scoped, tag = 'output window, operand 0, single buffered']
    %16 = vsyncpa [#allocation3], 0
    %17 = vsyncpa [#allocation6], 0
    %18 = vsyncpa [#allocation9], 0
    %19 = vsyncpa [#allocation4], 0
    // Predicated region
    $region2: #{tpu_custom_call.1} parent=1 // pred_check
      _
    $region3: #{tpu_custom_call.1} parent=1 // pred_check_branch
      %21 = sbr.rel (0) target = $region5
    $region4: #{tpu_custom_call.1} parent=1 // pred_region
      _
    $region5: #{tpu_custom_call.1} parent=1 // pred_fallthru
      _
    // Predicated region
    $region6: #{tpu_custom_call.1} parent=1 // pred_check
      _
    $region7: #{tpu_custom_call.1} parent=1 // pred_check_branch
      %23 = sbr.rel (0) target = $region9
    $region8: #{tpu_custom_call.1} parent=1 // pred_region
      _
    $region9: #{tpu_custom_call.1} parent=1 // pred_fallthru
      _
    // Predicated region
    $region10: #{tpu_custom_call.1} parent=1 // pred_check
      _
    $region11: #{tpu_custom_call.1} parent=1 // pred_check_branch
      %25 = sbr.rel (0) target = $region13
    $region12: #{tpu_custom_call.1} parent=1 // pred_region
      _
    $region13: #{tpu_custom_call.1} parent=1 // pred_fallthru
      _
    // Predicated region
    $region14: #{tpu_custom_call.1} parent=1 // pred_check
      _
    $region15: #{tpu_custom_call.1} parent=1 // pred_check_branch
      %27 = sbr.rel (0) target = $region17
    $region16: #{tpu_custom_call.1} parent=1 // pred_region
      %29 = vsyncadd [#allocation3], 0
      %s30 = sshll.u32 %s3, 4
      %s31 = int_to_ptr.hbm [resolvable:$true] %s30
      %s32 = sshll.u32 [#allocation2], 4
      %s33 = int_to_ptr.vmem [resolvable:$true] %s32
      %38 = dma.hbm_to_vmem [thread:$0]  %s31, 2048, %s33, [#allocation3], 128, 128, 8
    $region17: #{tpu_custom_call.1} parent=1 // pred_fallthru
      _
    // Predicated region
    $region18: #{tpu_custom_call.1} parent=1 // pred_check
      _
    $region19: #{tpu_custom_call.1} parent=1 // pred_check_branch
      %40 = sbr.rel (0) target = $region21
    $region20: #{tpu_custom_call.1} parent=1 // pred_region
      _
    $region21: #{tpu_custom_call.1} parent=1 // pred_fallthru
      _
    // Predicated region
    $region22: #{tpu_custom_call.1} parent=1 // pred_check
      _
    $region23: #{tpu_custom_call.1} parent=1 // pred_check_branch
      %42 = sbr.rel (0) target = $region25
    $region24: #{tpu_custom_call.1} parent=1 // pred_region
      %44 = vsyncadd [#allocation6], 0
      %s45 = sshll.u32 %s5, 4
      %s46 = int_to_ptr.hbm [resolvable:$true] %s45
      %s47 = sshll.u32 [#allocation5], 4
      %s48 = int_to_ptr.vmem [resolvable:$true] %s47
      %53 = dma.hbm_to_vmem [thread:$0]  %s46, 2048, %s48, [#allocation6], 64, 64, 4
    $region25: #{tpu_custom_call.1} parent=1 // pred_fallthru
      _
    // Predicated region
    $region26: #{tpu_custom_call.1} parent=1 // pred_check
      _
    $region27: #{tpu_custom_call.1} parent=1 // pred_check_branch
      %55 = sbr.rel (0) target = $region29
    $region28: #{tpu_custom_call.1} parent=1 // pred_region
      _
    $region29: #{tpu_custom_call.1} parent=1 // pred_fallthru
      _
    // Predicated region
    $region30: #{tpu_custom_call.1} parent=1 // pred_check
      _
    $region31: #{tpu_custom_call.1} parent=1 // pred_check_branch
      %57 = sbr.rel (0) target = $region33
    $region32: #{tpu_custom_call.1} parent=1 // pred_region
      %59 = vsyncadd [#allocation6], 0
      %s60 = sshll.u32 %s7, 4
      %s61 = int_to_ptr.hbm [resolvable:$true] %s60
      %s62 = sshll.u32 [#allocation7], 4
      %s63 = int_to_ptr.vmem [resolvable:$true] %s62
      %68 = dma.hbm_to_vmem [thread:$0]  %s61, 1024, %s63, [#allocation6], 64, 64, 4
    $region33: #{tpu_custom_call.1} parent=1 // pred_fallthru
      _
    // Predicated region
    $region34: #{tpu_custom_call.1} parent=1 // pred_check
      _
    $region35: #{tpu_custom_call.1} parent=1 // pred_check_branch
      %70 = sbr.rel (0) target = $region37
    $region36: #{tpu_custom_call.1} parent=1 // pred_region
      _
    $region37: #{tpu_custom_call.1} parent=1 // pred_fallthru
      _
    // Predicated region
    $region38: #{tpu_custom_call.1} parent=1 // pred_check
      _
    $region39: #{tpu_custom_call.1} parent=1 // pred_check_branch
      %72 = sbr.rel (0) target = $region41
    $region40: #{tpu_custom_call.1} parent=1 // pred_region
      %74 = vsyncadd [#allocation9], 0
      %s75 = sshll.u32 %s9, 4
      %s76 = int_to_ptr.hbm [resolvable:$true] %s75
      %s77 = sshll.u32 [#allocation8], 4
      %s78 = int_to_ptr.vmem [resolvable:$true] %s77
      %83 = dma.hbm_to_vmem [thread:$0]  %s76, 1024, %s78, [#allocation9], 64, 64, 4
    $region41: #{tpu_custom_call.1} parent=1 // pred_fallthru
      _
    // Predicated region
    $region42: #{tpu_custom_call.1} parent=1 // pred_check
      _
    $region43: #{tpu_custom_call.1} parent=1 // pred_check_branch
      %85 = sbr.rel (0) target = $region45
    $region44: #{tpu_custom_call.1} parent=1 // pred_region
      _
    $region45: #{tpu_custom_call.1} parent=1 // pred_fallthru
      _
    // Predicated region
    $region46: #{tpu_custom_call.1} parent=1 // pred_check
      _
    $region47: #{tpu_custom_call.1} parent=1 // pred_check_branch
      %87 = sbr.rel (0) target = $region49
    $region48: #{tpu_custom_call.1} parent=1 // pred_region
      %89 = dma.done [#allocation3], 2048
    $region49: #{tpu_custom_call.1} parent=1 // pred_fallthru
      _
    // Predicated region
    $region50: #{tpu_custom_call.1} parent=1 // pred_check
      _
    $region51: #{tpu_custom_call.1} parent=1 // pred_check_branch
      %91 = sbr.rel (0) target = $region53
    $region52: #{tpu_custom_call.1} parent=1 // pred_region
      %93 = dma.done [#allocation6], 2048
    $region53: #{tpu_custom_call.1} parent=1 // pred_fallthru
      _
    // Predicated region
    $region54: #{tpu_custom_call.1} parent=1 // pred_check
      _
    $region55: #{tpu_custom_call.1} parent=1 // pred_check_branch
      %95 = sbr.rel (0) target = $region57
    $region56: #{tpu_custom_call.1} parent=1 // pred_region
      %97 = dma.done [#allocation6], 1024
    $region57: #{tpu_custom_call.1} parent=1 // pred_fallthru
      _
    // Predicated region
    $region58: #{tpu_custom_call.1} parent=1 // pred_check
      _
    $region59: #{tpu_custom_call.1} parent=1 // pred_check_branch
      %99 = sbr.rel (0) target = $region61
    $region60: #{tpu_custom_call.1} parent=1 // pred_region
      %101 = dma.done [#allocation9], 1024
    $region61: #{tpu_custom_call.1} parent=1 // pred_fallthru
      _
    %v103 = vld [vmem:[%s0] sm:$0xf]
    %v104 = vld [vmem:[%s0 + $0x4] sm:$0xf]
    %v105 = vld [vmem:[%s0 + $0x8] sm:$0xf]
    %v106 = vld [vmem:[%s0 + $0xc] sm:$0xf]
    %v107 = vld [vmem:[%s1] sm:$0xf]
    %v108 = vld [vmem:[%s2] sm:$0x1]
    %v110 = vperm.slane %v108, 0
    %v116 = vunpack.c.l.b16 %v103
    %v117 = vunpack.c.l.b16 %v104
    %v118 = vunpack.c.l.b16 %v105
    %v119 = vunpack.c.l.b16 %v106
    %v120 = vpack.c.b16 %v117, %v116
    %v121 = vpack.c.b16 %v119, %v118
    %vm122 = vcmask 64512
    %v124 = vsel %vm122, %v120, 0
    %v127 = vsel %vm122, %v121, 0
    %vm129 = vcmask 1043456
    %v131 = vsel %vm129, %v107, 0
    %133 = vmatpush.bf16.msra.mxu0 0
    %134 = vmatpush.bf16.msra.mxu0 0
    %135 = vmatpush.bf16.msra.mxu0 0
    %136 = vmatpush.bf16.msra.mxu0 0
    %137 = vmatpush.bf16.msra.mxu0 0
    %138 = vmatpush.bf16.msra.mxu0 0
    %139 = vmatpush.bf16.msra.mxu0 0
    %140 = vmatpush.bf16.msra.mxu0 %v131
    %141 = vmatmul.bf16.gmra.mxu0 %v124
    %v142 = vpop.f32.mrf.mxu0
    %v143 = vadd.f32 %v110, %v142
    %v144 = vpop.f32.mrf.mxu0
    %v145 = vadd.f32 %v110, %v144
    %146 = vmatmul.bf16.gmra.mxu0 %v127
    %v147 = vpop.f32.mrf.mxu0
    %v148 = vadd.f32 %v110, %v147
    %v149 = vpop.f32.mrf.mxu0
    %v150 = vadd.f32 %v110, %v149
    %151 = vdwg.mxu0
    %v152 = vpack.c.bf16 %v143, %v143
    %v153 = vpack.c.bf16 %v145, %v145
    %v154 = vpack.c.bf16 %v148, %v148
    %v155 = vpack.c.bf16 %v150, %v150
    %v156 = vunpack.c.l.bf16 %v152
    %v157 = vunpack.c.l.bf16 %v153
    %v158 = vunpack.c.l.bf16 %v154
    %v159 = vunpack.c.l.bf16 %v155
    %v160 = vmax.f32 %v156, 0.0
    %v161 = vmax.f32 %v157, 0.0
    %v162 = vmax.f32 %v158, 0.0
    %v163 = vmax.f32 %v159, 0.0
    %v164 = vpack.c.bf16 %v161, %v160
    %v165 = vpack.c.bf16 %v163, %v162
    %v166 = vld [vmem:[#allocation2] sm:$0xff]
    %v167 = vld [vmem:[#allocation2 + $0x8] sm:$0xff]
    %v168 = vld [vmem:[#allocation2 + $0x10] sm:$0xff]
    %v169 = vld [vmem:[#allocation2 + $0x18] sm:$0xff]
    %v170 = vld [vmem:[#allocation2 + $0x20] sm:$0xff]
    %v171 = vld [vmem:[#allocation2 + $0x28] sm:$0xff]
    %v172 = vld [vmem:[#allocation2 + $0x30] sm:$0xff]
    %v173 = vld [vmem:[#allocation2 + $0x38] sm:$0xff]
    %v174 = vld [vmem:[#allocation2 + $0x40] sm:$0xff]
    %v175 = vld [vmem:[#allocation2 + $0x48] sm:$0xff]
    %v176 = vld [vmem:[#allocation2 + $0x50] sm:$0xff]
    %v177 = vld [vmem:[#allocation2 + $0x58] sm:$0xff]
    %v178 = vld [vmem:[#allocation2 + $0x60] sm:$0xff]
    %v179 = vld [vmem:[#allocation2 + $0x68] sm:$0xff]
    %v180 = vld [vmem:[#allocation2 + $0x70] sm:$0xff]
    %v181 = vld [vmem:[#allocation2 + $0x78] sm:$0xff]
    %v182 = vld [vmem:[%s4] sm:$0x3]
    %v184 = vperm.slane %v182, 0
    %v185 = vperm.slane %v182, 1
    %v204 = vunpack.c.l.b16 %v166
    %v205 = vunpack.c.h.b16 %v166
    %v206 = vunpack.c.l.b16 %v167
    %v207 = vunpack.c.h.b16 %v167
    %v208 = vunpack.c.l.b16 %v168
    %v209 = vunpack.c.h.b16 %v168
    %v210 = vunpack.c.l.b16 %v169
    %v211 = vunpack.c.h.b16 %v169
    %v212 = vunpack.c.l.b16 %v170
    %v213 = vunpack.c.h.b16 %v170
    %v214 = vunpack.c.l.b16 %v171
    %v215 = vunpack.c.h.b16 %v171
    %v216 = vunpack.c.l.b16 %v172
    %v217 = vunpack.c.h.b16 %v172
    %v218 = vunpack.c.l.b16 %v173
    %v219 = vunpack.c.h.b16 %v173
    %v220 = vunpack.c.l.b16 %v174
    %v221 = vunpack.c.h.b16 %v174
    %v222 = vunpack.c.l.b16 %v175
    %v223 = vunpack.c.h.b16 %v175
    %v224 = vunpack.c.l.b16 %v176
    %v225 = vunpack.c.h.b16 %v176
    %v226 = vunpack.c.l.b16 %v177
    %v227 = vunpack.c.h.b16 %v177
    %v228 = vunpack.c.l.b16 %v178
    %v229 = vunpack.c.h.b16 %v178
    %v230 = vunpack.c.l.b16 %v179
    %v231 = vunpack.c.h.b16 %v179
    %v232 = vunpack.c.l.b16 %v180
    %v233 = vunpack.c.h.b16 %v180
    %v234 = vunpack.c.l.b16 %v181
    %v235 = vunpack.c.h.b16 %v181
    %v236 = vpack.c.b16 %v206, %v204
    %v237 = vpack.c.b16 %v207, %v205
    %v238 = vpack.c.b16 %v210, %v208
    %v239 = vpack.c.b16 %v211, %v209
    %v240 = vpack.c.b16 %v214, %v212
    %v241 = vpack.c.b16 %v215, %v213
    %v242 = vpack.c.b16 %v218, %v216
    %v243 = vpack.c.b16 %v219, %v217
    %v244 = vpack.c.b16 %v222, %v220
    %v245 = vpack.c.b16 %v223, %v221
    %v246 = vpack.c.b16 %v226, %v224
    %v247 = vpack.c.b16 %v227, %v225
    %v248 = vpack.c.b16 %v230, %v228
    %v249 = vpack.c.b16 %v231, %v229
    %v250 = vpack.c.b16 %v234, %v232
    %v251 = vpack.c.b16 %v235, %v233
    %268 = vmatpush.bf16.msra.mxu0 %v250
    %269 = vmatpush.bf16.msra.mxu0 %v248
    %270 = vmatpush.bf16.msra.mxu0 %v246
    %271 = vmatpush.bf16.msra.mxu0 %v244
    %272 = vmatpush.bf16.msra.mxu0 %v242
    %273 = vmatpush.bf16.msra.mxu0 %v240
    %274 = vmatpush.bf16.msra.mxu0 %v238
    %275 = vmatpush.bf16.msra.mxu0 %v236
    %276 = vmatmul.bf16.gmra.mxu0 %v164
    %v277 = vpop.f32.mrf.mxu0
    %v278 = vadd.f32 %v184, %v277
    %v279 = vpop.f32.mrf.mxu0
    %v280 = vadd.f32 %v184, %v279
    %281 = vmatmul.bf16.gmra.mxu0 %v165
    %v282 = vpop.f32.mrf.mxu0
    %v283 = vadd.f32 %v184, %v282
    %v284 = vpop.f32.mrf.mxu0
    %v285 = vadd.f32 %v184, %v284
    %286 = vdwg.mxu0
    %287 = vmatpush.bf16.msra.mxu0 %v251
    %288 = vmatpush.bf16.msra.mxu0 %v249
    %289 = vmatpush.bf16.msra.mxu0 %v247
    %290 = vmatpush.bf16.msra.mxu0 %v245
    %291 = vmatpush.bf16.msra.mxu0 %v243
    %292 = vmatpush.bf16.msra.mxu0 %v241
    %293 = vmatpush.bf16.msra.mxu0 %v239
    %294 = vmatpush.bf16.msra.mxu0 %v237
    %295 = vmatmul.bf16.gmra.mxu0 %v164
    %v296 = vpop.f32.mrf.mxu0
    %v297 = vadd.f32 %v185, %v296
    %v298 = vpop.f32.mrf.mxu0
    %v299 = vadd.f32 %v185, %v298
    %300 = vmatmul.bf16.gmra.mxu0 %v165
    %v301 = vpop.f32.mrf.mxu0
    %v302 = vadd.f32 %v185, %v301
    %v303 = vpop.f32.mrf.mxu0
    %v304 = vadd.f32 %v185, %v303
    %305 = vdwg.mxu0
    %v306 = vpack.c.bf16 %v297, %v278
    %v307 = vpack.c.bf16 %v299, %v280
    %v308 = vpack.c.bf16 %v302, %v283
    %v309 = vpack.c.bf16 %v304, %v285
    %v310 = vunpack.c.l.bf16 %v306
    %v311 = vunpack.c.h.bf16 %v306
    %v312 = vunpack.c.l.bf16 %v307
    %v313 = vunpack.c.h.bf16 %v307
    %v314 = vunpack.c.l.bf16 %v308
    %v315 = vunpack.c.h.bf16 %v308
    %v316 = vunpack.c.l.bf16 %v309
    %v317 = vunpack.c.h.bf16 %v309
    %v318 = vmax.f32 %v310, 0.0
    %v319 = vmax.f32 %v311, 0.0
    %v320 = vmax.f32 %v312, 0.0
    %v321 = vmax.f32 %v313, 0.0
    %v322 = vmax.f32 %v314, 0.0
    %v323 = vmax.f32 %v315, 0.0
    %v324 = vmax.f32 %v316, 0.0
    %v325 = vmax.f32 %v317, 0.0
    %v326 = vpack.c.bf16 %v320, %v318
    %v327 = vpack.c.bf16 %v321, %v319
    %v328 = vpack.c.bf16 %v324, %v322
    %v329 = vpack.c.bf16 %v325, %v323
    %v330 = vld [vmem:[#allocation5] sm:$0xf]
    %v331 = vld [vmem:[#allocation5 + $0x4] sm:$0xf]
    %v332 = vld [vmem:[#allocation5 + $0x8] sm:$0xf]
    %v333 = vld [vmem:[#allocation5 + $0xc] sm:$0xf]
    %v334 = vld [vmem:[#allocation5 + $0x10] sm:$0xf]
    %v335 = vld [vmem:[#allocation5 + $0x14] sm:$0xf]
    %v336 = vld [vmem:[#allocation5 + $0x18] sm:$0xf]
    %v337 = vld [vmem:[#allocation5 + $0x1c] sm:$0xf]
    %v338 = vld [vmem:[#allocation5 + $0x20] sm:$0xf]
    %v339 = vld [vmem:[#allocation5 + $0x24] sm:$0xf]
    %v340 = vld [vmem:[#allocation5 + $0x28] sm:$0xf]
    %v341 = vld [vmem:[#allocation5 + $0x2c] sm:$0xf]
    %v342 = vld [vmem:[#allocation5 + $0x30] sm:$0xf]
    %v343 = vld [vmem:[#allocation5 + $0x34] sm:$0xf]
    %v344 = vld [vmem:[#allocation5 + $0x38] sm:$0xf]
    %v345 = vld [vmem:[#allocation5 + $0x3c] sm:$0xf]
    %v346 = vld [vmem:[#allocation5 + $0x40] sm:$0xf]
    %v347 = vld [vmem:[#allocation5 + $0x44] sm:$0xf]
    %v348 = vld [vmem:[#allocation5 + $0x48] sm:$0xf]
    %v349 = vld [vmem:[#allocation5 + $0x4c] sm:$0xf]
    %v350 = vld [vmem:[#allocation5 + $0x50] sm:$0xf]
    %v351 = vld [vmem:[#allocation5 + $0x54] sm:$0xf]
    %v352 = vld [vmem:[#allocation5 + $0x58] sm:$0xf]
    %v353 = vld [vmem:[#allocation5 + $0x5c] sm:$0xf]
    %v354 = vld [vmem:[#allocation5 + $0x60] sm:$0xf]
    %v355 = vld [vmem:[#allocation5 + $0x64] sm:$0xf]
    %v356 = vld [vmem:[#allocation5 + $0x68] sm:$0xf]
    %v357 = vld [vmem:[#allocation5 + $0x6c] sm:$0xf]
    %v358 = vld [vmem:[#allocation5 + $0x70] sm:$0xf]
    %v359 = vld [vmem:[#allocation5 + $0x74] sm:$0xf]
    %v360 = vld [vmem:[#allocation5 + $0x78] sm:$0xf]
    %v361 = vld [vmem:[#allocation5 + $0x7c] sm:$0xf]
    %v362 = vld [vmem:[%s6] sm:$0x1]
    %v364 = vperm.slane %v362, 0
    %v398 = vunpack.c.l.b16 %v330
    %v399 = vunpack.c.l.b16 %v331
    %v400 = vunpack.c.l.b16 %v332
    %v401 = vunpack.c.l.b16 %v333
    %v402 = vunpack.c.l.b16 %v334
    %v403 = vunpack.c.l.b16 %v335
    %v404 = vunpack.c.l.b16 %v336
    %v405 = vunpack.c.l.b16 %v337
    %v406 = vunpack.c.l.b16 %v338
    %v407 = vunpack.c.l.b16 %v339
    %v408 = vunpack.c.l.b16 %v340
    %v409 = vunpack.c.l.b16 %v341
    %v410 = vunpack.c.l.b16 %v342
    %v411 = vunpack.c.l.b16 %v343
    %v412 = vunpack.c.l.b16 %v344
    %v413 = vunpack.c.l.b16 %v345
    %v414 = vunpack.c.l.b16 %v346
    %v415 = vunpack.c.l.b16 %v347
    %v416 = vunpack.c.l.b16 %v348
    %v417 = vunpack.c.l.b16 %v349
    %v418 = vunpack.c.l.b16 %v350
    %v419 = vunpack.c.l.b16 %v351
    %v420 = vunpack.c.l.b16 %v352
    %v421 = vunpack.c.l.b16 %v353
    %v422 = vunpack.c.l.b16 %v354
    %v423 = vunpack.c.l.b16 %v355
    %v424 = vunpack.c.l.b16 %v356
    %v425 = vunpack.c.l.b16 %v357
    %v426 = vunpack.c.l.b16 %v358
    %v427 = vunpack.c.l.b16 %v359
    %v428 = vunpack.c.l.b16 %v360
    %v429 = vunpack.c.l.b16 %v361
    %v430 = vpack.c.b16 %v399, %v398
    %v431 = vpack.c.b16 %v401, %v400
    %v432 = vpack.c.b16 %v403, %v402
    %v433 = vpack.c.b16 %v405, %v404
    %v434 = vpack.c.b16 %v407, %v406
    %v435 = vpack.c.b16 %v409, %v408
    %v436 = vpack.c.b16 %v411, %v410
    %v437 = vpack.c.b16 %v413, %v412
    %v438 = vpack.c.b16 %v415, %v414
    %v439 = vpack.c.b16 %v417, %v416
    %v440 = vpack.c.b16 %v419, %v418
    %v441 = vpack.c.b16 %v421, %v420
    %v442 = vpack.c.b16 %v423, %v422
    %v443 = vpack.c.b16 %v425, %v424
    %v444 = vpack.c.b16 %v427, %v426
    %v445 = vpack.c.b16 %v429, %v428
    %462 = vmatpush.bf16.msra.mxu0 %v437
    %463 = vmatpush.bf16.msra.mxu0 %v436
    %464 = vmatpush.bf16.msra.mxu0 %v435
    %465 = vmatpush.bf16.msra.mxu0 %v434
    %466 = vmatpush.bf16.msra.mxu0 %v433
    %467 = vmatpush.bf16.msra.mxu0 %v432
    %468 = vmatpush.bf16.msra.mxu0 %v431
    %469 = vmatpush.bf16.msra.mxu0 %v430
    %470 = vmatmul.bf16.gmra.mxu0 %v326
    %v471 = vpop.f32.mrf.mxu0
    %v472 = vadd.f32 %v364, %v471
    %v473 = vpop.f32.mrf.mxu0
    %v474 = vadd.f32 %v364, %v473
    %475 = vmatmul.bf16.gmra.mxu0 %v328
    %v476 = vpop.f32.mrf.mxu0
    %v477 = vadd.f32 %v364, %v476
    %v478 = vpop.f32.mrf.mxu0
    %v479 = vadd.f32 %v364, %v478
    %480 = vdwg.mxu0
    %481 = vmatpush.bf16.msra.mxu0 %v445
    %482 = vmatpush.bf16.msra.mxu0 %v444
    %483 = vmatpush.bf16.msra.mxu0 %v443
    %484 = vmatpush.bf16.msra.mxu0 %v442
    %485 = vmatpush.bf16.msra.mxu0 %v441
    %486 = vmatpush.bf16.msra.mxu0 %v440
    %487 = vmatpush.bf16.msra.mxu0 %v439
    %488 = vmatpush.bf16.msra.mxu0 %v438
    %489 = vmatmul.bf16.gmra.mxu0 %v327
    %v490 = vpop.f32.mrf.mxu0
    %v491 = vadd.f32 %v472, %v490
    %v492 = vpop.f32.mrf.mxu0
    %v493 = vadd.f32 %v474, %v492
    %494 = vmatmul.bf16.gmra.mxu0 %v329
    %v495 = vpop.f32.mrf.mxu0
    %v496 = vadd.f32 %v477, %v495
    %v497 = vpop.f32.mrf.mxu0
    %v498 = vadd.f32 %v479, %v497
    %499 = vdwg.mxu0
    %v500 = vpack.c.bf16 %v491, %v491
    %v501 = vpack.c.bf16 %v493, %v493
    %v502 = vpack.c.bf16 %v496, %v496
    %v503 = vpack.c.bf16 %v498, %v498
    %v504 = vunpack.c.l.bf16 %v500
    %v505 = vunpack.c.l.bf16 %v501
    %v506 = vunpack.c.l.bf16 %v502
    %v507 = vunpack.c.l.bf16 %v503
    %v508 = vmax.f32 %v504, 0.0
    %v509 = vmax.f32 %v505, 0.0
    %v510 = vmax.f32 %v506, 0.0
    %v511 = vmax.f32 %v507, 0.0
    %v512 = vpack.c.bf16 %v509, %v508
    %v513 = vpack.c.bf16 %v511, %v510
    %v514 = vld [vmem:[#allocation7] sm:$0xf]
    %v515 = vld [vmem:[#allocation7 + $0x4] sm:$0xf]
    %v516 = vld [vmem:[#allocation7 + $0x8] sm:$0xf]
    %v517 = vld [vmem:[#allocation7 + $0xc] sm:$0xf]
    %v518 = vld [vmem:[#allocation7 + $0x10] sm:$0xf]
    %v519 = vld [vmem:[#allocation7 + $0x14] sm:$0xf]
    %v520 = vld [vmem:[#allocation7 + $0x18] sm:$0xf]
    %v521 = vld [vmem:[#allocation7 + $0x1c] sm:$0xf]
    %v522 = vld [vmem:[#allocation7 + $0x20] sm:$0xf]
    %v523 = vld [vmem:[#allocation7 + $0x24] sm:$0xf]
    %v524 = vld [vmem:[#allocation7 + $0x28] sm:$0xf]
    %v525 = vld [vmem:[#allocation7 + $0x2c] sm:$0xf]
    %v526 = vld [vmem:[#allocation7 + $0x30] sm:$0xf]
    %v527 = vld [vmem:[#allocation7 + $0x34] sm:$0xf]
    %v528 = vld [vmem:[#allocation7 + $0x38] sm:$0xf]
    %v529 = vld [vmem:[#allocation7 + $0x3c] sm:$0xf]
    %v530 = vld [vmem:[%s8] sm:$0x1]
    %v532 = vperm.slane %v530, 0
    %v550 = vunpack.c.l.b16 %v514
    %v551 = vunpack.c.l.b16 %v515
    %v552 = vunpack.c.l.b16 %v516
    %v553 = vunpack.c.l.b16 %v517
    %v554 = vunpack.c.l.b16 %v518
    %v555 = vunpack.c.l.b16 %v519
    %v556 = vunpack.c.l.b16 %v520
    %v557 = vunpack.c.l.b16 %v521
    %v558 = vunpack.c.l.b16 %v522
    %v559 = vunpack.c.l.b16 %v523
    %v560 = vunpack.c.l.b16 %v524
    %v561 = vunpack.c.l.b16 %v525
    %v562 = vunpack.c.l.b16 %v526
    %v563 = vunpack.c.l.b16 %v527
    %v564 = vunpack.c.l.b16 %v528
    %v565 = vunpack.c.l.b16 %v529
    %v566 = vpack.c.b16 %v551, %v550
    %v567 = vpack.c.b16 %v553, %v552
    %v568 = vpack.c.b16 %v555, %v554
    %v569 = vpack.c.b16 %v557, %v556
    %v570 = vpack.c.b16 %v559, %v558
    %v571 = vpack.c.b16 %v561, %v560
    %v572 = vpack.c.b16 %v563, %v562
    %v573 = vpack.c.b16 %v565, %v564
    %582 = vmatpush.bf16.msra.mxu0 %v573
    %583 = vmatpush.bf16.msra.mxu0 %v572
    %584 = vmatpush.bf16.msra.mxu0 %v571
    %585 = vmatpush.bf16.msra.mxu0 %v570
    %586 = vmatpush.bf16.msra.mxu0 %v569
    %587 = vmatpush.bf16.msra.mxu0 %v568
    %588 = vmatpush.bf16.msra.mxu0 %v567
    %589 = vmatpush.bf16.msra.mxu0 %v566
    %590 = vmatmul.bf16.gmra.mxu0 %v512
    %v591 = vpop.f32.mrf.mxu0
    %v592 = vadd.f32 %v532, %v591
    %v593 = vpop.f32.mrf.mxu0
    %v594 = vadd.f32 %v532, %v593
    %595 = vmatmul.bf16.gmra.mxu0 %v513
    %v596 = vpop.f32.mrf.mxu0
    %v597 = vadd.f32 %v532, %v596
    %v598 = vpop.f32.mrf.mxu0
    %v599 = vadd.f32 %v532, %v598
    %600 = vdwg.mxu0
    %v601 = vpack.c.bf16 %v592, %v592
    %v602 = vpack.c.bf16 %v594, %v594
    %v603 = vpack.c.bf16 %v597, %v597
    %v604 = vpack.c.bf16 %v599, %v599
    %v605 = vunpack.c.l.bf16 %v601
    %v606 = vunpack.c.l.bf16 %v602
    %v607 = vunpack.c.l.bf16 %v603
    %v608 = vunpack.c.l.bf16 %v604
    %v609 = vmax.f32 %v605, 0.0
    %v610 = vmax.f32 %v606, 0.0
    %v611 = vmax.f32 %v607, 0.0
    %v612 = vmax.f32 %v608, 0.0
    %v613 = vpack.c.bf16 %v610, %v609
    %v614 = vpack.c.bf16 %v612, %v611
    %v615 = vld [vmem:[#allocation8] sm:$0xf]
    %v616 = vld [vmem:[#allocation8 + $0x4] sm:$0xf]
    %v617 = vld [vmem:[#allocation8 + $0x8] sm:$0xf]
    %v618 = vld [vmem:[#allocation8 + $0xc] sm:$0xf]
    %v619 = vld [vmem:[#allocation8 + $0x10] sm:$0xf]
    %v620 = vld [vmem:[#allocation8 + $0x14] sm:$0xf]
    %v621 = vld [vmem:[#allocation8 + $0x18] sm:$0xf]
    %v622 = vld [vmem:[#allocation8 + $0x1c] sm:$0xf]
    %v623 = vld [vmem:[#allocation8 + $0x20] sm:$0xf]
    %v624 = vld [vmem:[#allocation8 + $0x24] sm:$0xf]
    %v625 = vld [vmem:[#allocation8 + $0x28] sm:$0xf]
    %v626 = vld [vmem:[#allocation8 + $0x2c] sm:$0xf]
    %v627 = vld [vmem:[#allocation8 + $0x30] sm:$0xf]
    %v628 = vld [vmem:[#allocation8 + $0x34] sm:$0xf]
    %v629 = vld [vmem:[#allocation8 + $0x38] sm:$0xf]
    %v630 = vld [vmem:[#allocation8 + $0x3c] sm:$0xf]
    %v631 = vld [vmem:[%s10] sm:$0x1]
    %v633 = vperm.slane %v631, 0
    %v651 = vunpack.c.l.b16 %v615
    %v652 = vunpack.c.l.b16 %v616
    %v653 = vunpack.c.l.b16 %v617
    %v654 = vunpack.c.l.b16 %v618
    %v655 = vunpack.c.l.b16 %v619
    %v656 = vunpack.c.l.b16 %v620
    %v657 = vunpack.c.l.b16 %v621
    %v658 = vunpack.c.l.b16 %v622
    %v659 = vunpack.c.l.b16 %v623
    %v660 = vunpack.c.l.b16 %v624
    %v661 = vunpack.c.l.b16 %v625
    %v662 = vunpack.c.l.b16 %v626
    %v663 = vunpack.c.l.b16 %v627
    %v664 = vunpack.c.l.b16 %v628
    %v665 = vunpack.c.l.b16 %v629
    %v666 = vunpack.c.l.b16 %v630
    %v667 = vpack.c.b16 %v652, %v651
    %v668 = vpack.c.b16 %v654, %v653
    %v669 = vpack.c.b16 %v656, %v655
    %v670 = vpack.c.b16 %v658, %v657
    %v671 = vpack.c.b16 %v660, %v659
    %v672 = vpack.c.b16 %v662, %v661
    %v673 = vpack.c.b16 %v664, %v663
    %v674 = vpack.c.b16 %v666, %v665
    %683 = vmatpush.bf16.msra.mxu0 %v674
    %684 = vmatpush.bf16.msra.mxu0 %v673
    %685 = vmatpush.bf16.msra.mxu0 %v672
    %686 = vmatpush.bf16.msra.mxu0 %v671
    %687 = vmatpush.bf16.msra.mxu0 %v670
    %688 = vmatpush.bf16.msra.mxu0 %v669
    %689 = vmatpush.bf16.msra.mxu0 %v668
    %690 = vmatpush.bf16.msra.mxu0 %v667
    %691 = vmatmul.bf16.gmra.mxu0 %v613
    %v692 = vpop.f32.mrf.mxu0
    %v693 = vadd.f32 %v633, %v692
    %v694 = vpop.f32.mrf.mxu0
    %v695 = vadd.f32 %v633, %v694
    %696 = vmatmul.bf16.gmra.mxu0 %v614
    %v697 = vpop.f32.mrf.mxu0
    %v698 = vadd.f32 %v633, %v697
    %v699 = vpop.f32.mrf.mxu0
    %v700 = vadd.f32 %v633, %v699
    %701 = vdwg.mxu0
    %v702 = vpack.c.bf16 %v693, %v693
    %v703 = vpack.c.bf16 %v695, %v695
    %v704 = vpack.c.bf16 %v698, %v698
    %v705 = vpack.c.bf16 %v700, %v700
    %706 = vst [vmem:[#allocation10] sm:$0xf] %v702
    %707 = vst [vmem:[#allocation10 + $0x4] sm:$0xf] %v703
    %708 = vst [vmem:[#allocation10 + $0x8] sm:$0xf] %v704
    %709 = vst [vmem:[#allocation10 + $0xc] sm:$0xf] %v705
    // Predicated region
    $region62: #{tpu_custom_call.1} parent=1 // pred_check
      _
    $region63: #{tpu_custom_call.1} parent=1 // pred_check_branch
      %711 = sbr.rel (0) target = $region65
    $region64: #{tpu_custom_call.1} parent=1 // pred_region
      %713 = vsyncadd [#allocation4], 0
      %s714 = sshll.u32 [#allocation10], 4
      %s715 = int_to_ptr.vmem [resolvable:$true] %s714
      %s716 = sshll.u32 %s11, 4
      %s717 = int_to_ptr.hbm [resolvable:$true] %s716
      %722 = dma.vmem_to_hbm [thread:$0]  %s715, 256, %s717, [#allocation4], 64, 64, 4
    $region65: #{tpu_custom_call.1} parent=1 // pred_fallthru
      _
    // Predicated region
    $region66: #{tpu_custom_call.1} parent=1 // pred_check
      _
    $region67: #{tpu_custom_call.1} parent=1 // pred_check_branch
      %724 = sbr.rel (0) target = $region69
    $region68: #{tpu_custom_call.1} parent=1 // pred_region
      %726 = dma.done [#allocation4], 256
    $region69: #{tpu_custom_call.1} parent=1 // pred_fallthru
      _
    %727 = vsyncpa [#allocation3], 1
    %728 = vsyncpa [#allocation6], 1
    %729 = vsyncpa [#allocation9], 1
    %730 = vsyncpa [#allocation4], 1

</llo_original>
